<compile_context>
chip_gen: v7x
topology: tpu7x:2x2x1
jax: 0.10.0
libtpu: 0.0.40
codegen_flags: <defaults>
</compile_context>

<pallas_src>
import functools

import jax
import jax.numpy as jnp
from jax.experimental import pallas as pl
from jax.experimental.pallas import tpu as pltpu

LANES = 128
TM_MAX = 1024      # rows per grid step (sublane tile); multiple of 8
NUM_CORES = 2      # leading "parallel" grid axis (v7x megacore; harmless elsewhere)


def _bce_dice_sums_kernel(x_ref, t_ref, out_ref, *, tm, n_elems,
                          tiles_per_core, needs_mask):
    c = pl.program_id(0)
    i = pl.program_id(1)

    @pl.when(i == 0)
    def _():
        out_ref[...] = jnp.zeros_like(out_ref)

    x = x_ref[...].astype(jnp.float32)
    t = t_ref[...].astype(jnp.float32)

    # Stable BCE-with-logits and sigmoid from one shared exp(-|x|):
    #   bce = max(x,0) - x*t + log1p(e),   p = [x>=0 ? 1 : e] / (1+e)
    e = jnp.exp(-jnp.abs(x))
    bce = jnp.maximum(x, 0.0) - x * t + jnp.log1p(e)
    p = jnp.where(x >= 0.0, 1.0, e) / (1.0 + e)

    if needs_mask:
        # Validity from the *logical* (unclamped) tile position; tiles whose
        # index_map got clamped land fully outside [0, n_elems) and vanish.
        tile = c * tiles_per_core + i
        row_ids = tile * tm + jax.lax.broadcasted_iota(
            jnp.int32, (tm, LANES), 0)
        full_rows = n_elems // LANES
        tail = n_elems % LANES
        if tail == 0:
            valid = row_ids < full_rows
        else:
            lane_ids = jax.lax.broadcasted_iota(jnp.int32, (tm, LANES), 1)
            valid = (row_ids < full_rows) | (
                (row_ids == full_rows) & (lane_ids < tail))
        bce = jnp.where(valid, bce, 0.0)
        p = jnp.where(valid, p, 0.0)
        t = jnp.where(valid, t, 0.0)

    def fold(v):  # (tm, 128) -> (8, 128): pure vreg-wise VPU adds
        return v.reshape(tm // 8, 8, LANES).sum(axis=0)

    out_ref[0:8, :] += fold(bce)        # [0] BCE-with-logits terms
    out_ref[8:16, :] += fold(p * t)     # [1] sigmoid(x) * t
    out_ref[16:24, :] += fold(p)        # [2] sigmoid(x)
    out_ref[24:32, :] += fold(t)        # [3] t


def bce_dice_loss(logits, targets, eps=1e-9):
    assert logits.shape == targets.shape
    n = int(logits.size)
    rows = pl.cdiv(n, LANES)

    def _as_slab(a):
        flat = a.reshape(-1)                       # native dtype, no upcast
        pad = rows * LANES - n
        if pad:                                    # only when numel % 128 != 0
            flat = jnp.pad(flat, (0, pad))
        return flat.reshape(rows, LANES)

    x2 = _as_slab(logits)
    t2 = _as_slab(targets)

    tm = min(TM_MAX, ((rows + 7) // 8) * 8)
    tiles = pl.cdiv(rows, tm)
    tiles_per_core = pl.cdiv(tiles, NUM_CORES)
    # Mask only if some (core, step) covers elements past the end of the data.
    needs_mask = (n % LANES != 0) or (NUM_CORES * tiles_per_core * tm != rows)

    def in_map(c, i):
        # Clamp so the DMA never targets a fully out-of-bounds block; the
        # in-kernel validity mask zeroes any duplicated/overhanging rows.
        return (jnp.minimum(c * tiles_per_core + i, tiles - 1), 0)

    kernel = functools.partial(
        _bce_dice_sums_kernel, tm=tm, n_elems=n,
        tiles_per_core=tiles_per_core, needs_mask=needs_mask)

    sums = pl.pallas_call(
        kernel,
        out_shape=jax.ShapeDtypeStruct((NUM_CORES, 32, LANES), jnp.float32),
        grid=(NUM_CORES, tiles_per_core),
        in_specs=[
            pl.BlockSpec((tm, LANES), in_map),
            pl.BlockSpec((tm, LANES), in_map),
        ],
        out_specs=pl.BlockSpec((None, 32, LANES), lambda c, i: (c, 0, 0)),
        compiler_params=pltpu.CompilerParams(
            dimension_semantics=("parallel", "arbitrary"),
            vmem_limit_bytes=32 * 1024 * 1024,
        ),
    )(x2, t2)

    # Epilogue: fold cores / sublanes / lanes, then combine the two losses.
    lane_sums = sums.reshape(NUM_CORES, 4, 8, LANES).sum(axis=(0, 2, 3))
    bce_sum, pt_sum, p_sum, t_sum = (lane_sums[0], lane_sums[1],
                                     lane_sums[2], lane_sums[3])

    bce_loss = bce_sum / n                       # BCEWithLogitsLoss mean
    dice_score = (2.0 * pt_sum + eps) / (p_sum + t_sum)
    return bce_loss + (1.0 - dice_score)


def _reference(logits, targets, eps=1e-9):
    x = logits.astype(jnp.float32)
    t = targets.astype(jnp.float32)
    p = jax.nn.sigmoid(x)
    bce = jnp.mean(jnp.maximum(x, 0.0) - x * t + jnp.log1p(jnp.exp(-jnp.abs(x))))
    dice = 1.0 - (2.0 * jnp.sum(p * t) + eps) / (jnp.sum(p) + jnp.sum(t))
    return bce + dice


if __name__ == "__main__":
    key = jax.random.PRNGKey(0)
    k1, k2 = jax.random.split(key)
    # NCHW, small shapes: batch=2, channels=4, spatial=16
    logits = jax.random.normal(k1, (2, 4, 16, 16), dtype=jnp.float32)
    targets = (
        jax.random.uniform(k2, (2, 4, 16, 16), dtype=jnp.float32) > 0.5
    ).astype(jnp.float32)

    out = jax.block_until_ready(bce_dice_loss(logits, targets))
    ref = _reference(logits, targets)
    assert jnp.allclose(out, ref, rtol=1e-5, atol=1e-5), (out, ref)
    print("KERNEL_OK")
</pallas_src>

<mosaic_0001>
module attributes {stable_mosaic.version = 11 : i64} {
  func.func @_bce_dice_sums_kernel(%arg0: i32, %arg1: i32, %arg2: memref<16x128xf32, #tpu.memory_space<vmem>>, %arg3: memref<16x128xf32, #tpu.memory_space<vmem>>, %arg4: memref<1x32x128xf32, #tpu.memory_space<vmem>>) attributes {dimension_semantics = [#tpu.dimension_semantics<parallel>, #tpu.dimension_semantics<arbitrary>], iteration_bounds = array<i64: 2, 1>, scalar_prefetch = 0 : i64, scratch_operands = 0 : i64, tpu.core_type = #tpu.core_type<tc>, window_params = [{transform_indices = @transform_0, window_bounds = array<i64: 16, 128>}, {transform_indices = @transform_1, window_bounds = array<i64: 16, 128>}, {transform_indices = @transform_2, window_bounds = array<i64: 1, 32, 128>}]} {
    %c0_i32 = arith.constant 0 : i32
    %0 = arith.cmpi eq, %arg1, %c0_i32 : i32
    %1 = arith.extui %0 : i1 to i32
    %c0_i32_0 = arith.constant 0 : i32
    %2 = arith.cmpi ne, %1, %c0_i32_0 : i32
    scf.if %2 {
      %cst_37 = arith.constant 0.000000e+00 : f32
      %69 = vector.broadcast %cst_37 : f32 to vector<32x128xf32>
      %c0_38 = arith.constant 0 : index
      %c0_39 = arith.constant 0 : index
      %c0_40 = arith.constant 0 : index
      %70 = vector.load %arg4[%c0_38, %c0_39, %c0_40] : memref<1x32x128xf32, #tpu.memory_space<vmem>>, vector<1x32x128xf32>
      %71 = vector.shape_cast %70 : vector<1x32x128xf32> to vector<32x128xf32>
      %72 = vector.shape_cast %69 : vector<32x128xf32> to vector<1x32x128xf32>
      tpu.vector_store %arg4[%c0_38, %c0_39, %c0_40], %72 {strides = array<i32>} : memref<1x32x128xf32, #tpu.memory_space<vmem>>, vector<1x32x128xf32>,
    } else {
    }
    %c0 = arith.constant 0 : index
    %c0_1 = arith.constant 0 : index
    %3 = vector.load %arg2[%c0, %c0_1] : memref<16x128xf32, #tpu.memory_space<vmem>>, vector<16x128xf32>
    %c0_2 = arith.constant 0 : index
    %c0_3 = arith.constant 0 : index
    %4 = vector.load %arg3[%c0_2, %c0_3] : memref<16x128xf32, #tpu.memory_space<vmem>>, vector<16x128xf32>
    %5 = math.absf %3 : vector<16x128xf32>
    %cst = arith.constant 0.000000e+00 : f32
    %6 = vector.broadcast %cst : f32 to vector<16x128xf32>
    %7 = arith.subf %6, %5 : vector<16x128xf32>
    %8 = math.exp %7 : vector<16x128xf32>
    %cst_4 = arith.constant 0.000000e+00 : f32
    %9 = vector.broadcast %cst_4 : f32 to vector<16x128xf32>
    %10 = arith.maximumf %3, %9 : vector<16x128xf32>
    %11 = arith.mulf %3, %4 : vector<16x128xf32>
    %12 = arith.subf %10, %11 : vector<16x128xf32>
    %13 = math.log1p %8 : vector<16x128xf32>
    %14 = arith.addf %12, %13 : vector<16x128xf32>
    %cst_5 = arith.constant 0.000000e+00 : f32
    %15 = vector.broadcast %cst_5 : f32 to vector<16x128xf32>
    %16 = arith.cmpf oge, %3, %15 : vector<16x128xf32>
    %cst_6 = arith.constant 1.000000e+00 : f32
    %17 = vector.broadcast %cst_6 : f32 to vector<16x128xf32>
    %18 = arith.select %16, %17, %8 : vector<16x128xi1>, vector<16x128xf32>
    %cst_7 = arith.constant 1.000000e+00 : f32
    %19 = vector.broadcast %cst_7 : f32 to vector<16x128xf32>
    %20 = arith.addf %19, %8 : vector<16x128xf32>
    %21 = arith.divf %18, %20 : vector<16x128xf32>
    %c1_i32 = arith.constant 1 : i32
    %22 = arith.muli %arg0, %c1_i32 : i32
    %23 = arith.addi %22, %arg1 : i32
    %c16_i32 = arith.constant 16 : i32
    %24 = arith.muli %23, %c16_i32 : i32
    %25 = tpu.iota {dimensions = array<i32: 0>} : vector<16x128xi32>
    %26 = vector.broadcast %24 : i32 to vector<16x128xi32>
    %27 = arith.addi %26, %25 : vector<16x128xi32>
    %c16_i32_8 = arith.constant 16 : i32
    %28 = vector.broadcast %c16_i32_8 : i32 to vector<16x128xi32>
    %29 = arith.cmpi slt, %27, %28 : vector<16x128xi32>
    %cst_9 = arith.constant 0.000000e+00 : f32
    %30 = vector.broadcast %cst_9 : f32 to vector<16x128xf32>
    %31 = arith.select %29, %14, %30 : vector<16x128xi1>, vector<16x128xf32>
    %cst_10 = arith.constant 0.000000e+00 : f32
    %32 = vector.broadcast %cst_10 : f32 to vector<16x128xf32>
    %33 = arith.select %29, %21, %32 : vector<16x128xi1>, vector<16x128xf32>
    %cst_11 = arith.constant 0.000000e+00 : f32
    %34 = vector.broadcast %cst_11 : f32 to vector<16x128xf32>
    %35 = arith.select %29, %4, %34 : vector<16x128xi1>, vector<16x128xf32>
    %c0_12 = arith.constant 0 : index
    %c0_13 = arith.constant 0 : index
    %c0_14 = arith.constant 0 : index
    %36 = vector.load %arg4[%c0_12, %c0_13, %c0_14] : memref<1x32x128xf32, #tpu.memory_space<vmem>>, vector<1x8x128xf32>
    %37 = vector.shape_cast %36 : vector<1x8x128xf32> to vector<8x128xf32>
    %38 = vector.shape_cast %31 : vector<16x128xf32> to vector<2x8x128xf32>
    %cst_15 = arith.constant dense<0.000000e+00> : vector<8x128xf32>
    %39 = vector.multi_reduction <add>, %38, %cst_15 [0] : vector<2x8x128xf32> to vector<8x128xf32>
    %40 = arith.addf %37, %39 : vector<8x128xf32>
    %c0_16 = arith.constant 0 : index
    %c0_17 = arith.constant 0 : index
    %c0_18 = arith.constant 0 : index
    %41 = vector.load %arg4[%c0_16, %c0_17, %c0_18] : memref<1x32x128xf32, #tpu.memory_space<vmem>>, vector<1x8x128xf32>
    %42 = vector.shape_cast %41 : vector<1x8x128xf32> to vector<8x128xf32>
    %43 = vector.shape_cast %40 : vector<8x128xf32> to vector<1x8x128xf32>
    tpu.vector_store %arg4[%c0_16, %c0_17, %c0_18], %43 {strides = array<i32>} : memref<1x32x128xf32, #tpu.memory_space<vmem>>, vector<1x8x128xf32>,
    %c0_19 = arith.constant 0 : index
    %c8 = arith.constant 8 : index
    %c0_20 = arith.constant 0 : index
    %44 = vector.load %arg4[%c0_19, %c8, %c0_20] : memref<1x32x128xf32, #tpu.memory_space<vmem>>, vector<1x8x128xf32>
    %45 = vector.shape_cast %44 : vector<1x8x128xf32> to vector<8x128xf32>
    %46 = arith.mulf %33, %35 : vector<16x128xf32>
    %47 = vector.shape_cast %46 : vector<16x128xf32> to vector<2x8x128xf32>
    %cst_21 = arith.constant dense<0.000000e+00> : vector<8x128xf32>
    %48 = vector.multi_reduction <add>, %47, %cst_21 [0] : vector<2x8x128xf32> to vector<8x128xf32>
    %49 = arith.addf %45, %48 : vector<8x128xf32>
    %c0_22 = arith.constant 0 : index
    %c8_23 = arith.constant 8 : index
    %c0_24 = arith.constant 0 : index
    %50 = vector.load %arg4[%c0_22, %c8_23, %c0_24] : memref<1x32x128xf32, #tpu.memory_space<vmem>>, vector<1x8x128xf32>
    %51 = vector.shape_cast %50 : vector<1x8x128xf32> to vector<8x128xf32>
    %52 = vector.shape_cast %49 : vector<8x128xf32> to vector<1x8x128xf32>
    tpu.vector_store %arg4[%c0_22, %c8_23, %c0_24], %52 {strides = array<i32>} : memref<1x32x128xf32, #tpu.memory_space<vmem>>, vector<1x8x128xf32>,
    %c0_25 = arith.constant 0 : index
    %c16 = arith.constant 16 : index
    %c0_26 = arith.constant 0 : index
    %53 = vector.load %arg4[%c0_25, %c16, %c0_26] : memref<1x32x128xf32, #tpu.memory_space<vmem>>, vector<1x8x128xf32>
    %54 = vector.shape_cast %53 : vector<1x8x128xf32> to vector<8x128xf32>
    %55 = vector.shape_cast %33 : vector<16x128xf32> to vector<2x8x128xf32>
    %cst_27 = arith.constant dense<0.000000e+00> : vector<8x128xf32>
    %56 = vector.multi_reduction <add>, %55, %cst_27 [0] : vector<2x8x128xf32> to vector<8x128xf32>
    %57 = arith.addf %54, %56 : vector<8x128xf32>
    %c0_28 = arith.constant 0 : index
    %c16_29 = arith.constant 16 : index
    %c0_30 = arith.constant 0 : index
    %58 = vector.load %arg4[%c0_28, %c16_29, %c0_30] : memref<1x32x128xf32, #tpu.memory_space<vmem>>, vector<1x8x128xf32>
    %59 = vector.shape_cast %58 : vector<1x8x128xf32> to vector<8x128xf32>
    %60 = vector.shape_cast %57 : vector<8x128xf32> to vector<1x8x128xf32>
    tpu.vector_store %arg4[%c0_28, %c16_29, %c0_30], %60 {strides = array<i32>} : memref<1x32x128xf32, #tpu.memory_space<vmem>>, vector<1x8x128xf32>,
    %c0_31 = arith.constant 0 : index
    %c24 = arith.constant 24 : index
    %c0_32 = arith.constant 0 : index
    %61 = vector.load %arg4[%c0_31, %c24, %c0_32] : memref<1x32x128xf32, #tpu.memory_space<vmem>>, vector<1x8x128xf32>
    %62 = vector.shape_cast %61 : vector<1x8x128xf32> to vector<8x128xf32>
    %63 = vector.shape_cast %35 : vector<16x128xf32> to vector<2x8x128xf32>
    %cst_33 = arith.constant dense<0.000000e+00> : vector<8x128xf32>
    %64 = vector.multi_reduction <add>, %63, %cst_33 [0] : vector<2x8x128xf32> to vector<8x128xf32>
    %65 = arith.addf %62, %64 : vector<8x128xf32>
    %c0_34 = arith.constant 0 : index
    %c24_35 = arith.constant 24 : index
    %c0_36 = arith.constant 0 : index
    %66 = vector.load %arg4[%c0_34, %c24_35, %c0_36] : memref<1x32x128xf32, #tpu.memory_space<vmem>>, vector<1x8x128xf32>
    %67 = vector.shape_cast %66 : vector<1x8x128xf32> to vector<8x128xf32>
    %68 = vector.shape_cast %65 : vector<8x128xf32> to vector<1x8x128xf32>
    tpu.vector_store %arg4[%c0_34, %c24_35, %c0_36], %68 {strides = array<i32>} : memref<1x32x128xf32, #tpu.memory_space<vmem>>, vector<1x8x128xf32>,
    return
  }
  func.func @transform_0(%arg0: i32, %arg1: i32) -> (i32, i32) {
    %c1_i32 = arith.constant 1 : i32
    %0 = arith.muli %arg0, %c1_i32 : i32
    %1 = arith.addi %0, %arg1 : i32
    %c0_i32 = arith.constant 0 : i32
    %2 = arith.minsi %1, %c0_i32 : i32
    %c0_i32_0 = arith.constant 0 : i32
    %c0_i32_1 = arith.constant 0 : i32
    return %2, %c0_i32_0 : i32, i32
  }
  func.func @transform_1(%arg0: i32, %arg1: i32) -> (i32, i32) {
    %c1_i32 = arith.constant 1 : i32
    %0 = arith.muli %arg0, %c1_i32 : i32
    %1 = arith.addi %0, %arg1 : i32
    %c0_i32 = arith.constant 0 : i32
    %2 = arith.minsi %1, %c0_i32 : i32
    %c0_i32_0 = arith.constant 0 : i32
    %c0_i32_1 = arith.constant 0 : i32
    return %2, %c0_i32_0 : i32, i32
  }
  func.func @transform_2(%arg0: i32, %arg1: i32) -> (i32, i32, i32) {
    %c0_i32 = arith.constant 0 : i32
    %c0_i32_0 = arith.constant 0 : i32
    %c0_i32_1 = arith.constant 0 : i32
    return %arg0, %c0_i32, %c0_i32_0 : i32, i32, i32
  }
}

</mosaic_0001>

<llo_original>
// kernel: tpu_custom_call.1
$region0: #{tpu_custom_call.1}
  #allocation0 [shape = 'u32[]', space=smem, size = 0x4, offset = 0x4, fixed_abs, tag = 'smem constant byte address 0x4 - core index']
  #allocation1 [shape = 'u32[144,128]{1,0:T(1,128)}', space=vmem, size = 0x12000, scoped, tag = 'internal scratch']
  %s0 = inlined_call_operand.hbm [shape: f32[16,128], index: 0, kind: input, shape index: {}]
  %s1 = inlined_call_operand.hbm [shape: f32[16,128], index: 1, kind: input, shape index: {}]
  %s2 = inlined_call_operand.hbm [shape: f32[2,32,128], index: 2, kind: output, shape index: {}]
  %s3 = sld [smem:[#allocation0]]
  $region53: #{tpu_custom_call.1} parent=0
    _
  %s5 = ssub.s32 1, %s3
  %s6 = scalar_select 0, %s5, %s3
  $region1: #{tpu_custom_call.1} parent=0
    #allocation2 [shape = 'u8[16384]{0}', space=vmem, size = 0x4000, scoped, tag = 'input window, operand 0']
    #allocation3 [shape = 's32[2]{0}', space=sflag, size = 0x8, scoped, tag = 'scoped memory for tpu_custom_call.1']
    #allocation4 [shape = 's32[2]{0}', space=sflag, size = 0x8, scoped, tag = 'scoped memory for tpu_custom_call.1']
    #allocation5 [shape = 'u8[16384]{0}', space=vmem, size = 0x4000, scoped, tag = 'input window, operand 1']
    #allocation6 [shape = 's32[2]{0}', space=sflag, size = 0x8, scoped, tag = 'scoped memory for tpu_custom_call.1']
    #allocation7 [shape = 'u8[32768]{0}', space=vmem, size = 0x8000, scoped, tag = 'output window, operand 0']
    %7 = vsyncpa [#allocation3], 0
    %s8 = scalar_lea.sflag [#allocation3], 1
    %9 = vsyncpa %s8, 0
    %10 = vsyncpa [#allocation6], 0
    %s11 = scalar_lea.sflag [#allocation6], 1
    %12 = vsyncpa %s11, 0
    %13 = vsyncpa [#allocation4], 0
    %s14 = scalar_lea.sflag [#allocation4], 1
    %15 = vsyncpa %s14, 0
    loop: start=0, step=1, limit=4
    $region2: #{tpu_custom_call.1} parent=1 // loop_pre_header
      _
    $region3: #{tpu_custom_call.1} parent=1 // loop_header
      %s17 = sphi 0, %s21
      %p18 = scmp.ge.s32.totalorder %s17, 4
      %s24 = sphi 0, %s36
      %s25 = sphi 0, %s32
      %s26 = sphi 0, %s24
      %s27 = sphi 0, %s25
      %s28 = sphi 0, %s26
      %s29 = sphi 0, %s27
      %s45 = sphi 0, %s47
      %s48 = sphi 0, %s45
      %s49 = sphi 0, %s48
      %s65 = sphi 0, %s49
      %s77 = sphi 0, %s79
      %s80 = sphi 0, %s77
      %s81 = sphi 0, %s80
      %s97 = sphi 0, %s81
      %s103 = sphi 0, %s105
      %s106 = sphi 0, %s103
      %s107 = sphi 0, %s106
      %s123 = sphi 0, %s107
    $region4: #{tpu_custom_call.1} parent=1 // loop_header_branch
      %20 = sbr.rel (%p18) target = $region8
    $region5: #{tpu_custom_call.1} parent=1 // loop_body
      %s22 = ssub.s32 %s17, 1
      %s23 = ssub.s32 %s17, 2
      %s30 = sadd.s32 1, %s25
      %p31 = scmp.ge.s32.totalorder %s30, 1
      %s32 = scalar_select %p31, 0, %s30
      %s33 = sadd.s32 1, %s24
      %s34 = scalar_select %p31, %s33, %s24
      %p35 = scmp.ge.s32.totalorder %s34, 2
      %s36 = scalar_select %p35, 0, %s34
      %s37 = sadd.s32 %s24, %s25
      %p38 = scmp.lt.s32.totalorder %s37, 0
      %s39 = scalar_select %p38, %s37, 0
      %s40 = sadd.s32 %s36, %s32
      %p41 = scmp.lt.s32.totalorder %s40, 0
      %s42 = scalar_select %p41, %s40, 0
      %s43 = ssub.s32 %s39, %s42
      %p44 = scmp.eq.s32.totalorder %s43, 0
      %s46 = sadd.s32 %s45, 1
      %s47 = scalar_select %p44, %s45, %s46
      %p50 = pneg %p44
      %p51 = scmp.eq.s32.totalorder %s17, 1
      %p52 = por %p50, %p51
      %p53 = scmp.ne.s32.totalorder %s45, %s48
      %p54 = scmp.eq.s32.totalorder %s17, 0
      %p55 = por %p53, %p54
      %p56 = scmp.ne.s32.totalorder %s45, %s48
      %p57 = scmp.eq.s32.totalorder %s22, 1
      %p58 = por %p56, %p57
      %p59 = scmp.ne.s32.totalorder %s48, %s49
      %p60 = scmp.eq.s32.totalorder %s22, 0
      %p61 = por %p59, %p60
      %p62 = scmp.ne.s32.totalorder %s48, %s49
      %p63 = scmp.eq.s32.totalorder %s23, 1
      %p64 = por %p62, %p63
      %p66 = scmp.ne.s32.totalorder %s49, %s65
      %p67 = scmp.eq.s32.totalorder %s23, 0
      %p68 = por %p66, %p67
      %s69 = sadd.s32 %s24, %s25
      %p70 = scmp.lt.s32.totalorder %s69, 0
      %s71 = scalar_select %p70, %s69, 0
      %s72 = sadd.s32 %s36, %s32
      %p73 = scmp.lt.s32.totalorder %s72, 0
      %s74 = scalar_select %p73, %s72, 0
      %s75 = ssub.s32 %s71, %s74
      %p76 = scmp.eq.s32.totalorder %s75, 0
      %s78 = sadd.s32 %s77, 1
      %s79 = scalar_select %p76, %s77, %s78
      %p82 = pneg %p76
      %p83 = scmp.eq.s32.totalorder %s17, 1
      %p84 = por %p82, %p83
      %p85 = scmp.ne.s32.totalorder %s77, %s80
      %p86 = scmp.eq.s32.totalorder %s17, 0
      %p87 = por %p85, %p86
      %p88 = scmp.ne.s32.totalorder %s77, %s80
      %p89 = scmp.eq.s32.totalorder %s22, 1
      %p90 = por %p88, %p89
      %p91 = scmp.ne.s32.totalorder %s80, %s81
      %p92 = scmp.eq.s32.totalorder %s22, 0
      %p93 = por %p91, %p92
      %p94 = scmp.ne.s32.totalorder %s80, %s81
      %p95 = scmp.eq.s32.totalorder %s23, 1
      %p96 = por %p94, %p95
      %p98 = scmp.ne.s32.totalorder %s81, %s97
      %p99 = scmp.eq.s32.totalorder %s23, 0
      %p100 = por %p98, %p99
      %s101 = ssub.s32 %s24, %s36
      %p102 = scmp.eq.s32.totalorder %s101, 0
      %s104 = sadd.s32 %s103, 1
      %s105 = scalar_select %p102, %s103, %s104
      %p108 = pneg %p102
      %p109 = scmp.eq.s32.totalorder %s17, 1
      %p110 = por %p108, %p109
      %p111 = scmp.ne.s32.totalorder %s103, %s106
      %p112 = scmp.eq.s32.totalorder %s17, 0
      %p113 = por %p111, %p112
      %p114 = scmp.ne.s32.totalorder %s103, %s106
      %p115 = scmp.eq.s32.totalorder %s22, 1
      %p116 = por %p114, %p115
      %p117 = scmp.ne.s32.totalorder %s106, %s107
      %p118 = scmp.eq.s32.totalorder %s22, 0
      %p119 = por %p117, %p118
      %p120 = scmp.ne.s32.totalorder %s106, %s107
      %p121 = scmp.eq.s32.totalorder %s23, 1
      %p122 = por %p120, %p121
      %p124 = scmp.ne.s32.totalorder %s107, %s123
      %p125 = scmp.eq.s32.totalorder %s23, 0
      %p126 = por %p124, %p125
      %p127 = scmp.le.s32.totalorder 1, %s17
      %p128 = scmp.lt.s32.totalorder %s17, 3
      %p129 = pnand %p127, %p128
      %p130 = pneg %p129
      // Predicated region
      $region9: #{tpu_custom_call.1} parent=5 // pred_check
        _
      $region10: #{tpu_custom_call.1} parent=5 // pred_check_branch
        %132 = sbr.rel (%p129) target = $region12
      $region11: #{tpu_custom_call.1} parent=5 // pred_region
        %s133 = ssub.s32 %s17, 1
      $region12: #{tpu_custom_call.1} parent=5 // pred_fallthru
        _
      %p134 = scmp.lt.s32.totalorder %s17, 2
      // Predicated region
      $region13: #{tpu_custom_call.1} parent=5 // pred_check
        %p135 = pneg %p134
      $region14: #{tpu_custom_call.1} parent=5 // pred_check_branch
        %137 = sbr.rel (%p135) target = $region16
      $region15: #{tpu_custom_call.1} parent=5 // pred_region
        // Predicated region
        $region17: #{tpu_custom_call.1} parent=15 // pred_check
          %p138 = pneg %p55
        $region18: #{tpu_custom_call.1} parent=15 // pred_check_branch
          %140 = sbr.rel (%p138) target = $region20
        $region19: #{tpu_custom_call.1} parent=15 // pred_region
          %s141 = sand.u32 %s45, 1
          %s142 = scalar_lea.sflag [#allocation3], %s141
          %s143 = sand.u32 %s45, 1
          %s144 = smul.addr %s143, 16
          %s145 = scalar_lea.vmem [#allocation2], %s144
          %s146 = sadd.s32 %s24, %s25
          %p147 = scmp.lt.s32.totalorder %s146, 0
          %s148 = scalar_select %p147, %s146, 0
          %s149 = smul.u32 2, %s148
          %s151 = ssub.s32 256, 256
          %152 = vsyncadd %s142, %s151
          %s153 = smul.addr %s149, 128
          %s154 = scalar_lea.hbm %s0, %s153
          %s155 = sshll.u32 %s145, 4
          %s156 = int_to_ptr.vmem [resolvable:$true] %s155
          %161 = dma.hbm_to_vmem [thread:$0]  %s154, 256, %s156, %s142, 128, 128, 8
        $region20: #{tpu_custom_call.1} parent=15 // pred_fallthru
          _
        // Predicated region
        $region21: #{tpu_custom_call.1} parent=15 // pred_check
          %p162 = pneg %p87
        $region22: #{tpu_custom_call.1} parent=15 // pred_check_branch
          %164 = sbr.rel (%p162) target = $region24
        $region23: #{tpu_custom_call.1} parent=15 // pred_region
          %s165 = sand.u32 %s77, 1
          %s166 = scalar_lea.sflag [#allocation6], %s165
          %s167 = sand.u32 %s77, 1
          %s168 = smul.addr %s167, 16
          %s169 = scalar_lea.vmem [#allocation5], %s168
          %s170 = sadd.s32 %s24, %s25
          %p171 = scmp.lt.s32.totalorder %s170, 0
          %s172 = scalar_select %p171, %s170, 0
          %s173 = smul.u32 2, %s172
          %s175 = ssub.s32 256, 256
          %176 = vsyncadd %s166, %s175
          %s177 = smul.addr %s173, 128
          %s178 = scalar_lea.hbm %s1, %s177
          %s179 = sshll.u32 %s169, 4
          %s180 = int_to_ptr.vmem [resolvable:$true] %s179
          %185 = dma.hbm_to_vmem [thread:$0]  %s178, 256, %s180, %s166, 128, 128, 8
        $region24: #{tpu_custom_call.1} parent=15 // pred_fallthru
          _
      $region16: #{tpu_custom_call.1} parent=5 // pred_fallthru
        _
      %p186 = scmp.le.s32.totalorder 1, %s17
      %p187 = scmp.lt.s32.totalorder %s17, 3
      %p188 = pnand %p186, %p187
      %p189 = pneg %p188
      // Predicated region
      $region25: #{tpu_custom_call.1} parent=5 // pred_check
        _
      $region26: #{tpu_custom_call.1} parent=5 // pred_check_branch
        %191 = sbr.rel (%p188) target = $region28
      $region27: #{tpu_custom_call.1} parent=5 // pred_region
        %s192 = ssub.s32 %s17, 1
        %s193 = sand.u32 %s48, 1
        %s194 = scalar_lea.sflag [#allocation3], %s193
        %s195 = sand.u32 %s48, 1
        %s196 = smul.addr %s195, 16
        %s197 = scalar_lea.vmem [#allocation2], %s196
        // Predicated region
        $region29: #{tpu_custom_call.1} parent=27 // pred_check
          %p198 = pneg %p61
        $region30: #{tpu_custom_call.1} parent=27 // pred_check_branch
          %200 = sbr.rel (%p198) target = $region32
        $region31: #{tpu_custom_call.1} parent=27 // pred_region
          %201 = dma.done %s194, 256
        $region32: #{tpu_custom_call.1} parent=27 // pred_fallthru
          _
        %s202 = sand.u32 %s80, 1
        %s203 = scalar_lea.sflag [#allocation6], %s202
        %s204 = sand.u32 %s80, 1
        %s205 = smul.addr %s204, 16
        %s206 = scalar_lea.vmem [#allocation5], %s205
        // Predicated region
        $region33: #{tpu_custom_call.1} parent=27 // pred_check
          %p207 = pneg %p93
        $region34: #{tpu_custom_call.1} parent=27 // pred_check_branch
          %209 = sbr.rel (%p207) target = $region36
        $region35: #{tpu_custom_call.1} parent=27 // pred_region
          %210 = dma.done %s203, 256
        $region36: #{tpu_custom_call.1} parent=27 // pred_fallthru
          _
        %s211 = sand.u32 %s48, 1
        %s212 = scalar_lea.sflag [#allocation3], %s211
        %s213 = sand.u32 %s48, 1
        %s214 = smul.addr %s213, 16
        %s215 = scalar_lea.vmem [#allocation2], %s214
        %p216 = pneg %p61
        %p217 = pneg %p58
        %s218 = sand.u32 %s80, 1
        %s219 = scalar_lea.sflag [#allocation6], %s218
        %s220 = sand.u32 %s80, 1
        %s221 = smul.addr %s220, 16
        %s222 = scalar_lea.vmem [#allocation5], %s221
        %p223 = pneg %p93
        %p224 = pneg %p90
        %p225 = pneg %p119
        %p226 = pneg %p116
        %s227 = sand.u32 %s106, 1
        %s228 = scalar_lea.sflag [#allocation4], %s227
        %s229 = sand.u32 %s106, 1
        %s230 = smul.addr %s229, 32
        %s231 = scalar_lea.vmem [#allocation7], %s230
        %s232 = sadd.s32 %s26, %s27
        %p233 = scmp.lt.s32.totalorder %s232, 0
        %s234 = scalar_select %p233, %s232, 0
        %s235 = smul.u32 2, %s234
        %s236 = sadd.s32 %s26, %s27
        %p237 = scmp.lt.s32.totalorder %s236, 0
        %s238 = scalar_select %p237, %s236, 0
        %s239 = smul.u32 2, %s238
        %p240 = scmp.eq.s32.totalorder %s27, 0
        // Predicated region
        $region37: #{tpu_custom_call.1} parent=27 // pred_check
          %p241 = pneg %p240
        $region38: #{tpu_custom_call.1} parent=27 // pred_check_branch
          %243 = sbr.rel (%p241) target = $region40
        $region39: #{tpu_custom_call.1} parent=27 // pred_region
          %244 = vst [vmem:[%s231] sm:$0xff] 0.0
          %245 = vst [vmem:[%s231 + $0x8] sm:$0xff] 0.0
          %246 = vst [vmem:[%s231 + $0x10] sm:$0xff] 0.0
          %247 = vst [vmem:[%s231 + $0x18] sm:$0xff] 0.0
        $region40: #{tpu_custom_call.1} parent=27 // pred_fallthru
          _
        %v248 = vld [vmem:[%s197] sm:$0xff]
        %v249 = vld [vmem:[%s197 + $0x8] sm:$0xff]
        %v250 = vld [vmem:[%s206] sm:$0xff]
        %v251 = vld [vmem:[%s206 + $0x8] sm:$0xff]
        %v252 = vand.u32 2147483647, %v248
        %v253 = vand.u32 2147483647, %v249
        %v254 = vsub.f32 0.0, %v252
        %v255 = vsub.f32 0.0, %v253
        %v256 = vmul.f32 %v254, 1.442695
        %v257 = vpow.pop %v256
        %v258 = vmul.f32 %v255, 1.442695
        %v259 = vpow.pop %v258
        %v260 = vmax.f32 %v248, 0.0
        %v261 = vmax.f32 %v249, 0.0
        %v262 = vmul.f32 %v248, %v250
        %v263 = vmul.f32 %v249, %v251
        %v264 = vsub.f32 %v260, %v262
        %v265 = vsub.f32 %v261, %v263
        %v266 = vadd.f32 %v257, 1.0
        %v267 = vlog2.pop %v266
        %v268 = vmul.f32 %v267, 0.6931472
        %v269 = vmul.f32 -0.5, %v257
        %v270 = vadd.f32 %v269, 1.0
        %v271 = vmul.f32 %v270, %v257
        %v272 = vand.u32 2147483647, %v257
        %vm273 = vcmp.lt.f32.partialorder %v272, 0.0004427343
        %v274 = vsel %vm273, %v271, %v268
        %v275 = vadd.f32 %v259, 1.0
        %v276 = vlog2.pop %v275
        %v277 = vmul.f32 %v276, 0.6931472
        %v278 = vmul.f32 -0.5, %v259
        %v279 = vadd.f32 %v278, 1.0
        %v280 = vmul.f32 %v279, %v259
        %v281 = vand.u32 2147483647, %v259
        %vm282 = vcmp.lt.f32.partialorder %v281, 0.0004427343
        %v283 = vsel %vm282, %v280, %v277
        %v284 = vadd.f32 %v264, %v274
        %v285 = vadd.f32 %v265, %v283
        %vm286 = vcmp.ge.f32.partialorder %v248, 0.0
        %vm287 = vcmp.ge.f32.partialorder %v249, 0.0
        %v288 = vsel %vm286, 1.0, %v257
        %v289 = vsel %vm287, 1.0, %v259
        %v290 = vadd.f32 %v257, 1.0
        %v291 = vadd.f32 %v259, 1.0
        %v292 = vrcp.pop %v290
        %v293 = vmul.f32 %v288, %v292
        %v294 = vrcp.pop %v291
        %v295 = vmul.f32 %v289, %v294
        %s296 = sadd.s32 %s26, %s27
        %s297 = smul.u32 %s296, 16
        %v298 = vlaneseq
        %v299 = vshrl.u32 %v298, 7
        %v300 = vadd.s32 %v299, 8
        %v301 = vstv %s297
        %v302 = vadd.s32 %v301, %v299
        %v303 = vadd.s32 %v301, %v300
        %vm304 = vcmp.lt.s32.totalorder %v302, 16
        %vm305 = vcmp.lt.s32.totalorder %v303, 16
        %v306 = vsel %vm304, %v284, 0.0
        %v307 = vsel %vm305, %v285, 0.0
        %v308 = vsel %vm304, %v293, 0.0
        %v309 = vsel %vm305, %v295, 0.0
        %v310 = vsel %vm304, %v250, 0.0
        %v311 = vsel %vm305, %v251, 0.0
        %v312 = vld [vmem:[%s231] sm:$0xff]
        %v313 = vadd.f32 %v306, %v307
        %v314 = vadd.f32 %v312, %v313
        %315 = vst [vmem:[%s231] sm:$0xff] %v314
        %v316 = vld [vmem:[%s231 + $0x8] sm:$0xff]
        %v317 = vmul.f32 %v308, %v310
        %v318 = vmul.f32 %v309, %v311
        %v319 = vadd.f32 %v317, %v318
        %v320 = vadd.f32 %v316, %v319
        %321 = vst [vmem:[%s231 + $0x8] sm:$0xff] %v320
        %v322 = vld [vmem:[%s231 + $0x10] sm:$0xff]
        %v323 = vadd.f32 %v308, %v309
        %v324 = vadd.f32 %v322, %v323
        %325 = vst [vmem:[%s231 + $0x10] sm:$0xff] %v324
        %v326 = vld [vmem:[%s231 + $0x18] sm:$0xff]
        %v327 = vadd.f32 %v310, %v311
        %v328 = vadd.f32 %v326, %v327
        %329 = vst [vmem:[%s231 + $0x18] sm:$0xff] %v328
        %s330 = sand.u32 %s106, 1
        %s331 = scalar_lea.sflag [#allocation4], %s330
        %s332 = sand.u32 %s106, 1
        %s333 = smul.addr %s332, 32
        %s334 = scalar_lea.vmem [#allocation7], %s333
        // Predicated region
        $region41: #{tpu_custom_call.1} parent=27 // pred_check
          %p335 = pneg %p116
        $region42: #{tpu_custom_call.1} parent=27 // pred_check_branch
          %337 = sbr.rel (%p335) target = $region44
        $region43: #{tpu_custom_call.1} parent=27 // pred_region
          %s339 = ssub.s32 512, 512
          %340 = vsyncadd %s331, %s339
          %s341 = smul.addr %s26, 4
          %s342 = smul.addr %s341, 128
          %s343 = scalar_lea.hbm %s2, %s342
          %s344 = sshll.u32 %s334, 4
          %s345 = int_to_ptr.vmem [resolvable:$true] %s344
          %350 = dma.vmem_to_hbm [thread:$0]  %s345, 512, %s343, %s331, 128, 128, 8
        $region44: #{tpu_custom_call.1} parent=27 // pred_fallthru
          _
      $region28: #{tpu_custom_call.1} parent=5 // pred_fallthru
        _
      %p351 = scmp.le.s32.totalorder 2, %s17
      // Predicated region
      $region45: #{tpu_custom_call.1} parent=5 // pred_check
        %p352 = pneg %p351
      $region46: #{tpu_custom_call.1} parent=5 // pred_check_branch
        %354 = sbr.rel (%p352) target = $region48
      $region47: #{tpu_custom_call.1} parent=5 // pred_region
        %s355 = ssub.s32 %s17, 2
        // Predicated region
        $region49: #{tpu_custom_call.1} parent=47 // pred_check
          %p356 = pneg %p122
        $region50: #{tpu_custom_call.1} parent=47 // pred_check_branch
          %358 = sbr.rel (%p356) target = $region52
        $region51: #{tpu_custom_call.1} parent=47 // pred_region
          %s359 = sand.u32 %s107, 1
          %s360 = scalar_lea.sflag [#allocation4], %s359
          %s361 = sand.u32 %s107, 1
          %s362 = smul.addr %s361, 32
          %s363 = scalar_lea.vmem [#allocation7], %s362
          %364 = dma.done %s360, 512
        $region52: #{tpu_custom_call.1} parent=47 // pred_fallthru
          _
      $region48: #{tpu_custom_call.1} parent=5 // pred_fallthru
        _
    $region6: #{tpu_custom_call.1} parent=1 // loop_footer
      %s21 = sadd.s32 1, %s17
    $region7: #{tpu_custom_call.1} parent=1 // loop_footer_branch
      %16 = sbr.rel target = $region3
    $region8: #{tpu_custom_call.1} parent=1 // loop_exit
      _
    %365 = vsyncpa [#allocation3], 1
    %s366 = scalar_lea.sflag [#allocation3], 1
    %367 = vsyncpa %s366, 1
    %368 = vsyncpa [#allocation6], 1
    %s369 = scalar_lea.sflag [#allocation6], 1
    %370 = vsyncpa %s369, 1
    %371 = vsyncpa [#allocation4], 1
    %s372 = scalar_lea.sflag [#allocation4], 1
    %373 = vsyncpa %s372, 1

</llo_original>
